<compile_context>
chip_gen: v7x
topology: tpu7x:2x2x1
jax: 0.10.0
libtpu: 0.0.40
codegen_flags: <defaults>
</compile_context>

<pallas_src>
import jax
import jax.numpy as jnp
from jax.experimental import pallas as pl
from jax.experimental.pallas import tpu as pltpu


def _round_up(x, m):
    return ((x + m - 1) // m) * m


def _lane_pad(n):
    # Last (lane) dim is physically padded to a multiple of 128 in VMEM.
    return _round_up(max(int(n), 1), 128)


def _choose_tk(D, max_tk=512):
    """K-axis (input_dim) tile: a multiple of 128 (x's lane dim) that divides D
    exactly (no ragged K tile feeding garbage into the accumulator); otherwise
    fall back to the full reduction dim."""
    if D <= max_tk:
        return D
    for tk in (512, 384, 256, 128):
        if D % tk == 0:
            return tk
    return D


def _vmem_footprint_bytes(tm, tk, C):
    # double-buffered x tile + double-buffered w tile + (out tile x2 + f32 acc)
    return 4 * (
        2 * tm * _lane_pad(tk)
        + 2 * _round_up(tk, 8) * _lane_pad(C)
        + 3 * tm * _lane_pad(C)
    )


def _choose_tm(N, tk, C, budget_bytes=24 * 1024 * 1024, max_tm=2048):
    """Largest batch tile (multiple of 8, <= max_tm) whose VMEM footprint fits
    the budget; degenerates to round_up(N, 8) for tiny batches."""
    tm = min(max_tm, _round_up(N, 8))
    while tm > 8 and _vmem_footprint_bytes(tm, tk, C) > budget_bytes:
        tm = _round_up(tm // 2, 8)
    return tm


def _linear_kernel(x_ref, w_ref, o_ref, acc_ref):
    k = pl.program_id(1)

    @pl.when(k == 0)
    def _():
        acc_ref[...] = jnp.zeros_like(acc_ref)

    # (tm, tk) @ (tk, C) on the MXU with f32 accumulation.
    acc_ref[...] += jnp.dot(
        x_ref[...], w_ref[...], preferred_element_type=jnp.float32
    )

    @pl.when(k == pl.num_programs(1) - 1)
    def _():
        o_ref[...] = acc_ref[...].astype(o_ref.dtype)


@jax.jit
def softmax_classifier_forward(x, w):
    """x: (N, input_dim) f32, w: (input_dim, num_classes) f32 -> logits (N, num_classes) f32."""
    N, D = x.shape
    D2, C = w.shape
    assert D == D2

    tk = _choose_tk(D)
    tm = _choose_tm(N, tk, C)

    grid = (pl.cdiv(N, tm), D // tk)  # ragged last batch tile handled by Pallas

    vmem_bytes = _vmem_footprint_bytes(tm, tk, C)
    vmem_limit = int(min(64 * 1024 * 1024,
                         max(32 * 1024 * 1024, vmem_bytes * 5 // 4)))

    return pl.pallas_call(
        _linear_kernel,
        out_shape=jax.ShapeDtypeStruct((N, C), x.dtype),
        grid=grid,
        in_specs=[
            pl.BlockSpec((tm, tk), lambda i, k: (i, k)),  # batch x K tile of x
            pl.BlockSpec((tk, C), lambda i, k: (k, 0)),   # K tile of weight
        ],
        out_specs=pl.BlockSpec((tm, C), lambda i, k: (i, 0)),  # resident across K
        scratch_shapes=[pltpu.VMEM((tm, C), jnp.float32)],
        compiler_params=pltpu.CompilerParams(
            # Batch tiles independent -> parallel (megacore on v7x);
            # K is the reduction axis -> arbitrary, placed last.
            dimension_semantics=("parallel", "arbitrary"),
            vmem_limit_bytes=vmem_limit,
        ),
    )(x, w)


if __name__ == "__main__":
    # Small, module-consistent shapes: batch=8, input_dim=32, num_classes=10.
    batch, input_dim, num_classes = 8, 32, 10

    key = jax.random.PRNGKey(0)
    kx, kw = jax.random.split(key)

    # Deterministic init mirroring torch: randn(input_dim, num_classes) * 0.001,
    # stored pre-transposed so the kernel does x @ w directly.
    w = jax.random.normal(kw, (input_dim, num_classes), dtype=jnp.float32) * 0.001
    x = jax.random.normal(kx, (batch, input_dim), dtype=jnp.float32)

    logits = softmax_classifier_forward(x, w)
    jax.block_until_ready(logits)

    # Sanity check against plain JAX reference.
    ref = x @ w
    assert logits.shape == (batch, num_classes)
    assert jnp.allclose(logits, ref, atol=1e-5, rtol=1e-5)

    print("KERNEL_OK")
</pallas_src>

<mosaic_0001>
module attributes {stable_mosaic.version = 11 : i64} {
  func.func @_linear_kernel(%arg0: i32, %arg1: i32, %arg2: memref<8x32xf32, #tpu.memory_space<vmem>>, %arg3: memref<32x10xf32, #tpu.memory_space<vmem>>, %arg4: memref<8x10xf32, #tpu.memory_space<vmem>>, %arg5: memref<8x10xf32, #tpu.memory_space<vmem>>) attributes {dimension_semantics = [#tpu.dimension_semantics<parallel>, #tpu.dimension_semantics<arbitrary>], iteration_bounds = array<i64: 1, 1>, scalar_prefetch = 0 : i64, scratch_operands = 1 : i64, tpu.core_type = #tpu.core_type<tc>, window_params = [{transform_indices = @transform_0, window_bounds = array<i64: 8, 32>}, {transform_indices = @transform_1, window_bounds = array<i64: 32, 10>}, {transform_indices = @transform_2, window_bounds = array<i64: 8, 10>}]} {
    %c0_i32 = arith.constant 0 : i32
    %0 = arith.cmpi eq, %arg1, %c0_i32 : i32
    %1 = arith.extui %0 : i1 to i32
    %c0_i32_0 = arith.constant 0 : i32
    %2 = arith.cmpi ne, %1, %c0_i32_0 : i32
    scf.if %2 {
      %cst_10 = arith.constant 0.000000e+00 : f32
      %12 = vector.broadcast %cst_10 : f32 to vector<8x10xf32>
      %c0_11 = arith.constant 0 : index
      %c0_12 = arith.constant 0 : index
      %13 = vector.load %arg5[%c0_11, %c0_12] : memref<8x10xf32, #tpu.memory_space<vmem>>, vector<8x10xf32>
      tpu.vector_store %arg5[%c0_11, %c0_12], %12 {strides = array<i32>} : memref<8x10xf32, #tpu.memory_space<vmem>>, vector<8x10xf32>,
    } else {
    }
    %c0 = arith.constant 0 : index
    %c0_1 = arith.constant 0 : index
    %3 = vector.load %arg5[%c0, %c0_1] : memref<8x10xf32, #tpu.memory_space<vmem>>, vector<8x10xf32>
    %c0_2 = arith.constant 0 : index
    %c0_3 = arith.constant 0 : index
    %4 = vector.load %arg2[%c0_2, %c0_3] : memref<8x32xf32, #tpu.memory_space<vmem>>, vector<8x32xf32>
    %c0_4 = arith.constant 0 : index
    %c0_5 = arith.constant 0 : index
    %5 = vector.load %arg3[%c0_4, %c0_5] : memref<32x10xf32, #tpu.memory_space<vmem>>, vector<32x10xf32>
    %cst = arith.constant dense<0.000000e+00> : vector<8x10xf32>
    %6 = tpu.matmul %4, %5, %cst {dimension_numbers = #tpu.dot_dimension_numbers<[1], [0], [0], [1], [0, 0, 1, 1], [], []>} : vector<8x32xf32>, vector<32x10xf32>, vector<8x10xf32> -> vector<8x10xf32>
    %7 = arith.addf %3, %6 : vector<8x10xf32>
    %c0_6 = arith.constant 0 : index
    %c0_7 = arith.constant 0 : index
    %8 = vector.load %arg5[%c0_6, %c0_7] : memref<8x10xf32, #tpu.memory_space<vmem>>, vector<8x10xf32>
    tpu.vector_store %arg5[%c0_6, %c0_7], %7 {strides = array<i32>} : memref<8x10xf32, #tpu.memory_space<vmem>>, vector<8x10xf32>,
    %c0_i32_8 = arith.constant 0 : i32
    %9 = arith.cmpi eq, %arg1, %c0_i32_8 : i32
    %10 = arith.extui %9 : i1 to i32
    %c0_i32_9 = arith.constant 0 : i32
    %11 = arith.cmpi ne, %10, %c0_i32_9 : i32
    scf.if %11 {
      %c0_10 = arith.constant 0 : index
      %c0_11 = arith.constant 0 : index
      %12 = vector.load %arg5[%c0_10, %c0_11] : memref<8x10xf32, #tpu.memory_space<vmem>>, vector<8x10xf32>
      %c0_12 = arith.constant 0 : index
      %c0_13 = arith.constant 0 : index
      %13 = vector.load %arg4[%c0_12, %c0_13] : memref<8x10xf32, #tpu.memory_space<vmem>>, vector<8x10xf32>
      tpu.vector_store %arg4[%c0_12, %c0_13], %12 {strides = array<i32>} : memref<8x10xf32, #tpu.memory_space<vmem>>, vector<8x10xf32>,
    } else {
    }
    return
  }
  func.func @transform_0(%arg0: i32, %arg1: i32) -> (i32, i32) {
    %c0_i32 = arith.constant 0 : i32
    return %arg0, %arg1 : i32, i32
  }
  func.func @transform_1(%arg0: i32, %arg1: i32) -> (i32, i32) {
    %c0_i32 = arith.constant 0 : i32
    %c0_i32_0 = arith.constant 0 : i32
    return %arg1, %c0_i32 : i32, i32
  }
  func.func @transform_2(%arg0: i32, %arg1: i32) -> (i32, i32) {
    %c0_i32 = arith.constant 0 : i32
    %c0_i32_0 = arith.constant 0 : i32
    return %arg0, %c0_i32 : i32, i32
  }
}

</mosaic_0001>

<llo_original>
// kernel: softmax_classifier_forward.1
$region0: #{softmax_classifier_forward.1}
  #allocation0 [shape = 'u32[]', space=smem, size = 0x4, offset = 0x4, fixed_abs, tag = 'smem constant byte address 0x4 - core index']
  #allocation1 [shape = 'u32[144,128]{1,0:T(1,128)}', space=vmem, size = 0x12000, scoped, tag = 'internal scratch']
  #allocation2 [shape = 'f32[8,10]{1,0:T(8,128)}', space=vmem, size = 0x1000, scoped, tag = 'scratch operand']
  %s0 = inlined_call_operand.vmem [shape: f32[8,32], index: 0, kind: input, shape index: {}]
  %s1 = inlined_call_operand.vmem [shape: f32[32,10], index: 1, kind: input, shape index: {}]
  %s2 = inlined_call_operand.hbm [shape: f32[8,10], index: 2, kind: output, shape index: {}]
  %s3 = sld [smem:[#allocation0]]
  $region26: #{softmax_classifier_forward.1} parent=0
    _
  %s5 = ssub.s32 1, %s3
  %s6 = scalar_select 0, %s5, %s3
  $region1: #{softmax_classifier_forward.1} parent=0
    #allocation3 [shape = 'u8[4096]{0}', space=vmem, size = 0x1000, scoped, tag = 'output window, operand 0, single buffered']
    #allocation4 [shape = 's32[1]{0}', space=sflag, size = 0x4, scoped, tag = 'scoped memory for softmax_classifier_forward.1']
    %7 = vsyncpa [#allocation4], 0
    // Predicated region
    $region2: #{softmax_classifier_forward.1} parent=1 // pred_check
      _
    $region3: #{softmax_classifier_forward.1} parent=1 // pred_check_branch
      %9 = sbr.rel (0) target = $region5
    $region4: #{softmax_classifier_forward.1} parent=1 // pred_region
      _
    $region5: #{softmax_classifier_forward.1} parent=1 // pred_fallthru
      _
    // Predicated region
    $region6: #{softmax_classifier_forward.1} parent=1 // pred_check
      _
    $region7: #{softmax_classifier_forward.1} parent=1 // pred_check_branch
      %11 = sbr.rel (0) target = $region9
    $region8: #{softmax_classifier_forward.1} parent=1 // pred_region
      _
    $region9: #{softmax_classifier_forward.1} parent=1 // pred_fallthru
      _
    %p12 = scmp.eq.s32.totalorder 0, 0
    // Predicated region
    $region10: #{softmax_classifier_forward.1} parent=1 // pred_check
      %p13 = pneg %p12
    $region11: #{softmax_classifier_forward.1} parent=1 // pred_check_branch
      %15 = sbr.rel (%p13) target = $region13
    $region12: #{softmax_classifier_forward.1} parent=1 // pred_region
      %vm16 = vcmask 80896
      %17 = vst.msk [vmem:[#allocation2] sm:$0xff] %vm16, 0.0
    $region13: #{softmax_classifier_forward.1} parent=1 // pred_fallthru
      _
    %v18 = vld [vmem:[#allocation2] sm:$0xff]
    %v19 = vld [vmem:[%s0] sm:$0xff]
    %v20 = vld [vmem:[%s1] sm:$0xff]
    %v21 = vld [vmem:[%s1 + $0x8] sm:$0xff]
    %v22 = vld [vmem:[%s1 + $0x10] sm:$0xff]
    %v23 = vld [vmem:[%s1 + $0x18] sm:$0xff]
    %vm24 = vcmask 261120
    %v26 = vsel %vm24, %v19, 0
    %28 = vmatprep.subr.mxu0 0.0
    %29 = vmatpush1.msra.mxu0 %v20
    %30 = vmatprep.subr.mxu0 0.0
    %31 = vmatpush1.msra.mxu0 %v21
    %32 = vmatprep.subr.mxu0 0.0
    %33 = vmatpush1.msra.mxu0 %v22
    %34 = vmatprep.subr.mxu0 0.0
    %35 = vmatpush1.msra.mxu0 %v23
    %36 = vmatprep.subr.mxu0 0.0
    %37 = vmatpush1.msra.mxu0 0.0
    %38 = vmatprep.subr.mxu0 0.0
    %39 = vmatpush1.msra.mxu0 0.0
    %40 = vmatprep.subr.mxu0 0.0
    %41 = vmatpush1.msra.mxu0 0.0
    %42 = vmatprep.subr.mxu0 0.0
    %43 = vmatpush1.msra.mxu0 0.0
    %44 = vmatprep.subr.mxu0 0.0
    %45 = vmatpush1.msra.mxu0 0.0
    %46 = vmatprep.subr.mxu0 0.0
    %47 = vmatpush1.msra.mxu0 0.0
    %48 = vmatprep.subr.mxu0 0.0
    %49 = vmatpush1.msra.mxu0 0.0
    %50 = vmatprep.subr.mxu0 0.0
    %51 = vmatpush1.msra.mxu0 0.0
    %52 = vmatprep.subr.mxu0 0.0
    %53 = vmatpush1.msra.mxu0 0.0
    %54 = vmatprep.subr.mxu0 0.0
    %55 = vmatpush1.msra.mxu0 0.0
    %56 = vmatprep.subr.mxu0 0.0
    %57 = vmatpush1.msra.mxu0 0.0
    %58 = vmatprep.subr.mxu0 0.0
    %59 = vmatpush1.msra.mxu0 0.0
    %60 = vmatprep.subr.mxu0 0.0
    %61 = vmatpush1.msra.mxu0 0.0
    %62 = vmatprep.subr.mxu0 0.0
    %63 = vmatpush1.msra.mxu0 0.0
    %64 = vmatprep.subr.mxu0 0.0
    %65 = vmatpush1.msra.mxu0 0.0
    %66 = vmatprep.subr.mxu0 0.0
    %67 = vmatpush1.msra.mxu0 0.0
    %68 = vmatprep.subr.mxu0 0.0
    %69 = vmatpush1.msra.mxu0 0.0
    %70 = vmatprep.subr.mxu0 0.0
    %71 = vmatpush1.msra.mxu0 0.0
    %72 = vmatprep.subr.mxu0 0.0
    %73 = vmatpush1.msra.mxu0 0.0
    %74 = vmatprep.subr.mxu0 0.0
    %75 = vmatpush1.msra.mxu0 0.0
    %76 = vmatprep.subr.mxu0 0.0
    %77 = vmatpush1.msra.mxu0 0.0
    %78 = vmatprep.subr.mxu0 0.0
    %79 = vmatpush1.msra.mxu0 0.0
    %80 = vmatprep.subr.mxu0 0.0
    %81 = vmatpush1.msra.mxu0 0.0
    %82 = vmatprep.subr.mxu0 0.0
    %83 = vmatpush1.msra.mxu0 0.0
    %84 = vmatprep.subr.mxu0 0.0
    %85 = vmatpush1.msra.mxu0 0.0
    %86 = vmatprep.subr.mxu0 0.0
    %87 = vmatpush1.msra.mxu0 0.0
    %88 = vmatprep.subr.mxu0 0.0
    %89 = vmatpush1.msra.mxu0 0.0
    %90 = vmatprep.subr.mxu0 0.0
    %91 = vmatpush1.msra.mxu0 0.0
    %92 = vmatprep.mubr.f32.mxu0 0.0
    %93 = vmatmul.mubr.f32.gmra.mrb[0].mxu0 %v26
    %v94 = vpop.f32.mrb[0].mxu0
    %v95 = vadd.f32 0.0, %v94
    %v96 = vpop.f32.mrb[0].mxu0
    %97 = vdwg.mxu0
    %v98 = vadd.f32 %v18, %v95
    %vm99 = vcmask 80896
    %100 = vst.msk [vmem:[#allocation2] sm:$0xff] %vm99, %v98
    // Predicated region
    $region14: #{softmax_classifier_forward.1} parent=1 // pred_check
      %p101 = pneg %p12
    $region15: #{softmax_classifier_forward.1} parent=1 // pred_check_branch
      %103 = sbr.rel (%p101) target = $region17
    $region16: #{softmax_classifier_forward.1} parent=1 // pred_region
      %v104 = vld [vmem:[#allocation2] sm:$0xff]
      %105 = vst.msk [vmem:[#allocation3] sm:$0xff] %vm99, %v104
    $region17: #{softmax_classifier_forward.1} parent=1 // pred_fallthru
      _
    // Predicated region
    $region18: #{softmax_classifier_forward.1} parent=1 // pred_check
      _
    $region19: #{softmax_classifier_forward.1} parent=1 // pred_check_branch
      %107 = sbr.rel (0) target = $region21
    $region20: #{softmax_classifier_forward.1} parent=1 // pred_region
      %s109 = ssub.s32 128, 128
      %110 = vsyncadd [#allocation4], %s109
      %s112 = sshll.u32 [#allocation3], 4
      %s113 = int_to_ptr.vmem [resolvable:$true] %s112
      %115 = dma.vmem_to_hbm [thread:$0]  %s113, 128, %s2, [#allocation4]
    $region21: #{softmax_classifier_forward.1} parent=1 // pred_fallthru
      _
    // Predicated region
    $region22: #{softmax_classifier_forward.1} parent=1 // pred_check
      _
    $region23: #{softmax_classifier_forward.1} parent=1 // pred_check_branch
      %117 = sbr.rel (0) target = $region25
    $region24: #{softmax_classifier_forward.1} parent=1 // pred_region
      %118 = dma.done [#allocation4], 128
    $region25: #{softmax_classifier_forward.1} parent=1 // pred_fallthru
      _
    %119 = vsyncpa [#allocation4], 1

</llo_original>
